<compile_context>
chip_gen: v7x
topology: tpu7x:2x2x1
jax: 0.10.0
libtpu: 0.0.40
codegen_flags: <defaults>
</compile_context>

<pallas_src>
import jax
import jax.numpy as jnp
from jax.experimental import pallas as pl
from jax.experimental.pallas import tpu as pltpu


# ----------------------------------------------------------------------------
# VMEM budgeting helpers (generation-aware: v7x has 64 MiB/TC, v5e/v6e 128 MiB).
# ----------------------------------------------------------------------------
def _vmem_budget_bytes():
    try:
        cap = pltpu.get_tpu_info().vmem_capacity_bytes
        return max(8 << 20, min(cap // 4, 32 << 20))   # v7x -> 16 MiB, v6e/v5e -> 32 MiB
    except Exception:  # pragma: no cover - conservative fallback
        return 16 << 20


def _pad_rows(rows, itemsize):
    # Sublane padding: f32 -> 8 rows, bf16 -> 16, int8/fp8 -> 32.
    sub = 8 * max(1, 4 // max(1, itemsize))
    return ((rows + sub - 1) // sub) * sub


def _pad_cols(cols):
    return ((cols + 127) // 128) * 128


def _snap_to_divisor(n, blk):
    """Largest block <= blk that divides n (avoids ragged tails / jnp.pad).
    Pathological n (e.g. prime class counts) degrade to small blocks, which is
    still correct; typical class counts (10/15/40/100/1000) have good divisors."""
    blk = int(max(1, min(blk, n)))
    while n % blk:
        blk -= 1
    return blk


def _choose_c_blk(n_cls, n_ctx, n_suffix, seq_len, ctx_dim, itemsize):
    cols = _pad_cols(ctx_dim)
    # Padded VMEM bytes per class per block step (prefix + suffix in, out).
    per_class = (_pad_rows(1, itemsize) + _pad_rows(n_suffix, itemsize)
                 + _pad_rows(seq_len, itemsize)) * cols * itemsize
    ctx_resident = 2 * _pad_rows(n_ctx, itemsize) * cols * itemsize
    budget = max(1 << 20, _vmem_budget_bytes() - ctx_resident - (1 << 20))
    c_blk = max(1, budget // (2 * per_class))          # 2 = double buffering
    # Keep >= ~4 grid steps so v7x's 2 TensorCores both get work and the
    # BlockSpec pipeline has steps to overlap; cap absolute size.
    c_blk = min(c_blk, max(1, (n_cls + 3) // 4), n_cls, 1024)
    return _snap_to_divisor(n_cls, int(c_blk))


# ----------------------------------------------------------------------------
# Kernel 1: class-blocked full assembly (the direct forward).
# ----------------------------------------------------------------------------
def _assemble_kernel(prefix_ref, ctx_ref, suffix_ref, out_ref):
    # prefix_ref: (C_BLK, 1, ctx_dim)
    # ctx_ref:    (n_ctx, ctx_dim)        grid-invariant, VMEM-resident
    # suffix_ref: (C_BLK, n_suffix, ctx_dim)
    # out_ref:    (C_BLK, seq_len, ctx_dim)
    c_blk = out_ref.shape[0]
    n_ctx, ctx_dim = ctx_ref.shape
    # Three direct slice stores (no concatenate): the boundaries are at sublane
    # offsets 1 and 1+n_ctx, so a concat would materialize the full output tile
    # as a temporary and still emit masked sub-stores.
    out_ref[:, 0:1, :] = prefix_ref[...].astype(out_ref.dtype)
    out_ref[:, 1:1 + n_ctx, :] = jnp.broadcast_to(
        ctx_ref[...][None, :, :], (c_blk, n_ctx, ctx_dim)).astype(out_ref.dtype)
    out_ref[:, 1 + n_ctx:, :] = suffix_ref[...].astype(out_ref.dtype)


def vl_prompt_learner_forward(text_ctx, token_prefix, token_suffix, c_blk=None):
    """Equivalent of VLPromptLearner.forward() (label=None)."""
    n_cls = token_prefix.shape[0]
    n_ctx, ctx_dim = text_ctx.shape
    n_suffix = token_suffix.shape[1]
    seq_len = 1 + n_ctx + n_suffix

    out_dtype = jnp.result_type(text_ctx.dtype, token_prefix.dtype,
                                token_suffix.dtype)
    itemsize = jnp.dtype(out_dtype).itemsize

    if c_blk is None:
        c_blk = _choose_c_blk(n_cls, n_ctx, n_suffix, seq_len, ctx_dim, itemsize)
    # No jnp.pad of the constant buffers: snap the block to a divisor of n_cls
    # so every grid step covers a full, in-bounds class block.
    c_blk = _snap_to_divisor(n_cls, int(c_blk))
    grid = (n_cls // c_blk,)

    # Actual (padded) VMEM footprint for this block choice.
    cols = _pad_cols(ctx_dim)
    blk_bytes = 2 * c_blk * (_pad_rows(1, itemsize) + _pad_rows(n_suffix, itemsize)
                             + _pad_rows(seq_len, itemsize)) * cols * itemsize
    ctx_bytes = 2 * _pad_rows(n_ctx, itemsize) * cols * itemsize
    needed = blk_bytes + ctx_bytes
    vmem_limit = int(min(needed + needed // 4 + (2 << 20), 32 << 20))

    bytes_accessed = (n_cls * (1 + n_suffix + seq_len) * ctx_dim
                      + n_ctx * ctx_dim) * itemsize
    cost = pl.CostEstimate(flops=0, transcendentals=0,
                           bytes_accessed=bytes_accessed)

    grid_spec = pltpu.PrefetchScalarGridSpec(
        num_scalar_prefetch=0,
        grid=grid,
        in_specs=[
            pl.BlockSpec((c_blk, 1, ctx_dim), lambda i: (i, 0, 0)),
            # Constant block index -> loaded once, stays VMEM-resident.
            pl.BlockSpec((n_ctx, ctx_dim), lambda i: (0, 0)),
            pl.BlockSpec((c_blk, n_suffix, ctx_dim), lambda i: (i, 0, 0)),
        ],
        out_specs=pl.BlockSpec((c_blk, seq_len, ctx_dim), lambda i: (i, 0, 0)),
    )

    return pl.pallas_call(
        _assemble_kernel,
        out_shape=jax.ShapeDtypeStruct((n_cls, seq_len, ctx_dim), out_dtype),
        grid_spec=grid_spec,
        compiler_params=pltpu.CompilerParams(
            dimension_semantics=("parallel",),
            vmem_limit_bytes=vmem_limit),
        cost_estimate=cost,
    )(token_prefix, text_ctx, token_suffix)


# ----------------------------------------------------------------------------
# Kernel 2: production hot path — persistent prompts buffer, rewrite only the
# ctx band [1 : 1+n_ctx] of every class with pipelined (double-buffered) DMAs.
# ----------------------------------------------------------------------------
def _make_ctx_band_updater(n_cls, n_ctx, ctx_dim, seq_len, c_blk, dtype):
    c_blk = _snap_to_divisor(n_cls, c_blk)
    n_steps = n_cls // c_blk
    itemsize = jnp.dtype(dtype).itemsize

    def kernel(ctx_ref, base_hbm, out_hbm, bcast, sems):
        # ctx_ref:  (n_ctx, ctx_dim) in VMEM, grid-invariant.
        # base_hbm / out_hbm: (n_cls, seq_len, ctx_dim) in HBM, aliased; only
        #   rows [1 : 1+n_ctx] of each class are rewritten.
        del base_hbm  # aliased with out_hbm; present only to carry the alias.
        i = pl.program_id(0)
        slot = i % 2

        def band_copy(class_start, sem_slot):
            return pltpu.make_async_copy(
                bcast,
                out_hbm.at[pl.ds(class_start, c_blk), pl.ds(1, n_ctx), :],
                sems.at[sem_slot])

        @pl.when(i == 0)
        def _():
            # ctx is identical for every class block: broadcast it into VMEM
            # exactly once; every DMA reads from this same (never rewritten)
            # buffer, so copies from consecutive steps can be in flight at once.
            bcast[...] = jnp.broadcast_to(
                ctx_ref[...][None, :, :], bcast.shape).astype(bcast.dtype)

        if n_steps > 2:
            @pl.when(i >= 2)
            def _():
                # Reclaim this semaphore slot: the copy issued two steps ago
                # must have landed before a new one is issued on the same slot.
                band_copy((i - 2) * c_blk, slot).wait()

        band_copy(i * c_blk, slot).start()

        @pl.when(i == n_steps - 1)
        def _():
            # Drain all copies still in flight (this step's and, if it exists,
            # the previous step's).
            if n_steps >= 2:
                band_copy((i - 1) * c_blk, (i - 1) % 2).wait()
            band_copy(i * c_blk, slot).wait()

    cost = pl.CostEstimate(
        flops=0, transcendentals=0,
        bytes_accessed=(n_cls * n_ctx * ctx_dim + n_ctx * ctx_dim) * itemsize)

    grid_spec = pltpu.PrefetchScalarGridSpec(
        num_scalar_prefetch=0,
        grid=(n_steps,),
        in_specs=[
            pl.BlockSpec((n_ctx, ctx_dim), lambda i: (0, 0)),
            pl.BlockSpec(memory_space=pl.ANY),   # persistent prompts (aliased)
        ],
        out_specs=pl.BlockSpec(memory_space=pl.ANY),
        scratch_shapes=[
            pltpu.VMEM((c_blk, n_ctx, ctx_dim), dtype),
            pltpu.SemaphoreType.DMA((2,)),
        ],
    )

    cols = _pad_cols(ctx_dim)
    band_bytes = c_blk * _pad_rows(n_ctx, itemsize) * cols * itemsize
    ctx_bytes = 2 * _pad_rows(n_ctx, itemsize) * cols * itemsize
    vmem_limit = int(min(band_bytes + ctx_bytes + (2 << 20), 32 << 20))

    return pl.pallas_call(
        kernel,
        out_shape=jax.ShapeDtypeStruct((n_cls, seq_len, ctx_dim), dtype),
        grid_spec=grid_spec,
        input_output_aliases={1: 0},   # prompts buffer updated in place
        compiler_params=pltpu.CompilerParams(
            # Cross-step state (ctx broadcast at step 0, DMA-slot pipelining)
            # requires sequential execution of the class axis.
            dimension_semantics=("arbitrary",),
            vmem_limit_bytes=vmem_limit),
        cost_estimate=cost,
    )


def vl_prompt_learner_forward_cached(text_ctx, base_prompts, c_blk=None):
    """Fast-path forward: token_prefix/token_suffix are constant buffers, so a
    persistent prompts array (prefix/suffix already in place) is aliased in/out
    and only the n_ctx learned rows per class are rewritten each call.

    IMPORTANT: wrap the caller in jax.jit(..., donate_argnums=<base_prompts>) —
    without donation XLA inserts a full copy of base_prompts, which erases the
    ~seq_len/n_ctx HBM-traffic advantage (it stays correct either way)."""
    n_cls, seq_len, ctx_dim = base_prompts.shape
    n_ctx = text_ctx.shape[0]
    itemsize = jnp.dtype(base_prompts.dtype).itemsize
    if c_blk is None:
        per_class = _pad_rows(n_ctx, itemsize) * _pad_cols(ctx_dim) * itemsize
        budget = max(1 << 20, _vmem_budget_bytes() // 2)
        c_blk = max(1, budget // per_class)
    c_blk = _snap_to_divisor(n_cls, int(min(c_blk, n_cls)))
    updater = _make_ctx_band_updater(n_cls, n_ctx, ctx_dim, seq_len, c_blk,
                                     base_prompts.dtype)
    return updater(text_ctx, base_prompts)


if __name__ == "__main__":
    # Small, module-consistent shapes. ctx_dim is a multiple of 128 so output
    # stores are lane-dense (real CLIP widths 512/768 also are).
    n_cls = 16
    n_ctx = 4          # cfg.TRAINER.IVLP.N_CTX_TEXT
    ctx_dim = 128      # cfg.TextEncoder.trans_width (toy, lane-dense)
    n_suffix = 3       # class-name / EOS tokens
    seq_len = 1 + n_ctx + n_suffix   # 8

    key = jax.random.PRNGKey(0)
    k_ctx, k_ctx2, k_pre, k_suf = jax.random.split(key, 4)

    # nn.Parameter(ctx_vectors); nn.init.normal_(std=0.02)
    text_ctx = 0.02 * jax.random.normal(k_ctx, (n_ctx, ctx_dim), dtype=jnp.float32)
    # Registered buffers token_prefix / token_suffix (token-embedding outputs);
    # synthesized deterministically here (no tokenizer / checkpoint in-script).
    token_prefix = jax.random.normal(k_pre, (n_cls, 1, ctx_dim), dtype=jnp.float32)
    token_suffix = jax.random.normal(k_suf, (n_cls, n_suffix, ctx_dim),
                                     dtype=jnp.float32)

    ctx_expanded = jnp.broadcast_to(text_ctx[None, :, :], (n_cls, n_ctx, ctx_dim))
    ref = jnp.concatenate([token_prefix, ctx_expanded, token_suffix], axis=1)

    # --- full-assembly forward, explicit block (divides n_cls -> grid of 2)
    prompts = vl_prompt_learner_forward(text_ctx, token_prefix, token_suffix,
                                        c_blk=8)
    jax.block_until_ready(prompts)
    assert prompts.shape == (n_cls, seq_len, ctx_dim)
    assert jnp.allclose(prompts, ref), "full-assembly Pallas output mismatch"

    # --- auto block choice (snapped to a divisor of n_cls, >=4 grid steps)
    prompts_auto = vl_prompt_learner_forward(text_ctx, token_prefix, token_suffix)
    jax.block_until_ready(prompts_auto)
    assert jnp.allclose(prompts_auto, ref), "auto-block Pallas output mismatch"

    # --- cached hot path: persistent prompts buffer, only ctx band rewritten.
    # base_prompts is DONATED so the pallas input/output alias is truly in place.
    new_ctx = 0.02 * jax.random.normal(k_ctx2, (n_ctx, ctx_dim), dtype=jnp.float32)
    cached = jax.jit(vl_prompt_learner_forward_cached,
                     donate_argnums=(1,), static_argnames=("c_blk",))
    prompts2 = cached(new_ctx, prompts_auto, c_blk=8)   # grid of 2, pipelined DMAs
    jax.block_until_ready(prompts2)

    ref2 = jnp.concatenate(
        [token_prefix,
         jnp.broadcast_to(new_ctx[None, :, :], (n_cls, n_ctx, ctx_dim)),
         token_suffix], axis=1)
    assert prompts2.shape == (n_cls, seq_len, ctx_dim)
    assert jnp.allclose(prompts2, ref2), "ctx-band update Pallas output mismatch"

    # TODO(synk): CLIP tokenization / token_embedding buffer construction happens
    # in the module __init__ (host side) and is out of scope for the kernel.
    print("KERNEL_OK")
</pallas_src>

<mosaic_0001>
module attributes {stable_mosaic.version = 11 : i64} {
  func.func @_assemble_kernel(%arg0: i32, %arg1: memref<8x1x128xf32, #tpu.memory_space<vmem>>, %arg2: memref<4x128xf32, #tpu.memory_space<vmem>>, %arg3: memref<8x3x128xf32, #tpu.memory_space<vmem>>, %arg4: memref<8x8x128xf32, #tpu.memory_space<vmem>>) attributes {dimension_semantics = [#tpu.dimension_semantics<parallel>], iteration_bounds = array<i64: 2>, scalar_prefetch = 0 : i64, scratch_operands = 0 : i64, tpu.core_type = #tpu.core_type<tc>, window_params = [{transform_indices = @transform_0, window_bounds = array<i64: 8, 1, 128>}, {pipeline_mode = #tpu.pipeline_mode<synchronous>, transform_indices = @transform_1, window_bounds = array<i64: 4, 128>}, {transform_indices = @transform_2, window_bounds = array<i64: 8, 3, 128>}, {transform_indices = @transform_3, window_bounds = array<i64: 8, 8, 128>}]} {
    %c0 = arith.constant 0 : index
    %c0_0 = arith.constant 0 : index
    %c0_1 = arith.constant 0 : index
    %0 = vector.load %arg1[%c0, %c0_0, %c0_1] : memref<8x1x128xf32, #tpu.memory_space<vmem>>, vector<8x1x128xf32>
    %c0_2 = arith.constant 0 : index
    %c0_3 = arith.constant 0 : index
    %c0_4 = arith.constant 0 : index
    %1 = vector.load %arg4[%c0_2, %c0_3, %c0_4] : memref<8x8x128xf32, #tpu.memory_space<vmem>>, vector<8x1x128xf32>
    tpu.vector_store %arg4[%c0_2, %c0_3, %c0_4], %0 {strides = array<i32>} : memref<8x8x128xf32, #tpu.memory_space<vmem>>, vector<8x1x128xf32>,
    %c0_5 = arith.constant 0 : index
    %c0_6 = arith.constant 0 : index
    %2 = vector.load %arg2[%c0_5, %c0_6] : memref<4x128xf32, #tpu.memory_space<vmem>>, vector<4x128xf32>
    %3 = vector.shape_cast %2 : vector<4x128xf32> to vector<1x4x128xf32>
    %4 = vector.shape_cast %3 : vector<1x4x128xf32> to vector<1x4x128xf32>
    %5 = vector.broadcast %4 : vector<1x4x128xf32> to vector<8x4x128xf32>
    %c0_7 = arith.constant 0 : index
    %c1 = arith.constant 1 : index
    %c0_8 = arith.constant 0 : index
    %6 = vector.load %arg4[%c0_7, %c1, %c0_8] : memref<8x8x128xf32, #tpu.memory_space<vmem>>, vector<8x4x128xf32>
    tpu.vector_store %arg4[%c0_7, %c1, %c0_8], %5 {strides = array<i32>} : memref<8x8x128xf32, #tpu.memory_space<vmem>>, vector<8x4x128xf32>,
    %c0_9 = arith.constant 0 : index
    %c0_10 = arith.constant 0 : index
    %c0_11 = arith.constant 0 : index
    %7 = vector.load %arg3[%c0_9, %c0_10, %c0_11] : memref<8x3x128xf32, #tpu.memory_space<vmem>>, vector<8x3x128xf32>
    %c0_12 = arith.constant 0 : index
    %c5 = arith.constant 5 : index
    %c0_13 = arith.constant 0 : index
    %8 = vector.load %arg4[%c0_12, %c5, %c0_13] : memref<8x8x128xf32, #tpu.memory_space<vmem>>, vector<8x3x128xf32>
    tpu.vector_store %arg4[%c0_12, %c5, %c0_13], %7 {strides = array<i32>} : memref<8x8x128xf32, #tpu.memory_space<vmem>>, vector<8x3x128xf32>,
    return
  }
  func.func @transform_0(%arg0: i32) -> (i32, i32, i32) {
    %c0_i32 = arith.constant 0 : i32
    %c0_i32_0 = arith.constant 0 : i32
    %c0_i32_1 = arith.constant 0 : i32
    return %arg0, %c0_i32, %c0_i32_0 : i32, i32, i32
  }
  func.func @transform_1(%arg0: i32) -> (i32, i32) {
    %c0_i32 = arith.constant 0 : i32
    %c0_i32_0 = arith.constant 0 : i32
    %c0_i32_1 = arith.constant 0 : i32
    return %c0_i32, %c0_i32_0 : i32, i32
  }
  func.func @transform_2(%arg0: i32) -> (i32, i32, i32) {
    %c0_i32 = arith.constant 0 : i32
    %c0_i32_0 = arith.constant 0 : i32
    %c0_i32_1 = arith.constant 0 : i32
    return %arg0, %c0_i32, %c0_i32_0 : i32, i32, i32
  }
  func.func @transform_3(%arg0: i32) -> (i32, i32, i32) {
    %c0_i32 = arith.constant 0 : i32
    %c0_i32_0 = arith.constant 0 : i32
    %c0_i32_1 = arith.constant 0 : i32
    return %arg0, %c0_i32, %c0_i32_0 : i32, i32, i32
  }
}

</mosaic_0001>

<llo_original>
// kernel: tpu_custom_call.1
$region0: #{tpu_custom_call.1}
  #allocation0 [shape = 'u32[]', space=smem, size = 0x4, offset = 0x4, fixed_abs, tag = 'smem constant byte address 0x4 - core index']
  #allocation1 [shape = 'u32[144,128]{1,0:T(1,128)}', space=vmem, size = 0x12000, scoped, tag = 'internal scratch']
  %s0 = inlined_call_operand.vmem [shape: f32[16,1,128], index: 0, kind: input, shape index: {}]
  %s1 = inlined_call_operand.vmem [shape: f32[4,128], index: 1, kind: input, shape index: {}]
  %s2 = inlined_call_operand.vmem [shape: f32[16,3,128], index: 2, kind: input, shape index: {}]
  %s3 = inlined_call_operand.hbm [shape: f32[16,8,128], index: 3, kind: output, shape index: {}]
  %s4 = sld [smem:[#allocation0]]
  $region45: #{tpu_custom_call.1} parent=0
    _
  %s6 = ssub.s32 1, %s4
  %s7 = scalar_select 0, %s6, %s4
  $region1: #{tpu_custom_call.1} parent=0
    #allocation2 [shape = 'u8[65536]{0}', space=vmem, size = 0x10000, scoped, tag = 'output window, operand 0']
    #allocation3 [shape = 's32[2]{0}', space=sflag, size = 0x8, scoped, tag = 'scoped memory for tpu_custom_call.1']
    %8 = vsyncpa [#allocation3], 0
    %s9 = scalar_lea.sflag [#allocation3], 1
    %10 = vsyncpa %s9, 0
    loop: start=0, step=1, limit=4
    $region2: #{tpu_custom_call.1} parent=1 // loop_pre_header
      _
    $region3: #{tpu_custom_call.1} parent=1 // loop_header
      %s12 = sphi 0, %s16
      %p13 = scmp.ge.s32.totalorder %s12, 4
      %s22 = sphi 0, %s24
      %s25 = sphi 0, %s22
      %s26 = sphi 0, %s25
      %s42 = sphi 0, %s26
      %s46 = sphi 0, %s46
      %s48 = sphi 0, %s46
      %s49 = sphi 0, %s48
      %s63 = sphi 0, %s49
      %s69 = sphi 0, %s71
      %s72 = sphi 0, %s69
      %s73 = sphi 0, %s72
      %s89 = sphi 0, %s73
      %s95 = sphi 0, %s97
      %s98 = sphi 0, %s95
      %s99 = sphi 0, %s98
      %s115 = sphi 0, %s99
    $region4: #{tpu_custom_call.1} parent=1 // loop_header_branch
      %15 = sbr.rel (%p13) target = $region8
    $region5: #{tpu_custom_call.1} parent=1 // loop_body
      %s17 = ssub.s32 %s12, 1
      %s18 = ssub.s32 %s12, 2
      %s19 = sadd.s32 %s12, 1
      %s20 = ssub.s32 %s12, %s19
      %p21 = scmp.eq.s32.totalorder %s20, 0
      %s23 = sadd.s32 %s22, 1
      %s24 = scalar_select %p21, %s22, %s23
      %p27 = pneg %p21
      %p28 = scmp.eq.s32.totalorder %s12, 1
      %p29 = por %p27, %p28
      %p30 = scmp.ne.s32.totalorder %s22, %s25
      %p31 = scmp.eq.s32.totalorder %s12, 0
      %p32 = por %p30, %p31
      %p33 = scmp.ne.s32.totalorder %s22, %s25
      %p34 = scmp.eq.s32.totalorder %s17, 1
      %p35 = por %p33, %p34
      %p36 = scmp.ne.s32.totalorder %s25, %s26
      %p37 = scmp.eq.s32.totalorder %s17, 0
      %p38 = por %p36, %p37
      %p39 = scmp.ne.s32.totalorder %s25, %s26
      %p40 = scmp.eq.s32.totalorder %s18, 1
      %p41 = por %p39, %p40
      %p43 = scmp.ne.s32.totalorder %s26, %s42
      %p44 = scmp.eq.s32.totalorder %s18, 0
      %p45 = por %p43, %p44
      %s47 = sadd.s32 %s46, 1
      %p50 = scmp.eq.s32.totalorder %s12, 1
      %p51 = scmp.ne.s32.totalorder %s46, %s48
      %p52 = scmp.eq.s32.totalorder %s12, 0
      %p53 = por %p51, %p52
      %p54 = scmp.ne.s32.totalorder %s46, %s48
      %p55 = scmp.eq.s32.totalorder %s17, 1
      %p56 = por %p54, %p55
      %p57 = scmp.ne.s32.totalorder %s48, %s49
      %p58 = scmp.eq.s32.totalorder %s17, 0
      %p59 = por %p57, %p58
      %p60 = scmp.ne.s32.totalorder %s48, %s49
      %p61 = scmp.eq.s32.totalorder %s18, 1
      %p62 = por %p60, %p61
      %p64 = scmp.ne.s32.totalorder %s49, %s63
      %p65 = scmp.eq.s32.totalorder %s18, 0
      %p66 = por %p64, %p65
      %s67 = ssub.s32 %s12, %s19
      %p68 = scmp.eq.s32.totalorder %s67, 0
      %s70 = sadd.s32 %s69, 1
      %s71 = scalar_select %p68, %s69, %s70
      %p74 = pneg %p68
      %p75 = scmp.eq.s32.totalorder %s12, 1
      %p76 = por %p74, %p75
      %p77 = scmp.ne.s32.totalorder %s69, %s72
      %p78 = scmp.eq.s32.totalorder %s12, 0
      %p79 = por %p77, %p78
      %p80 = scmp.ne.s32.totalorder %s69, %s72
      %p81 = scmp.eq.s32.totalorder %s17, 1
      %p82 = por %p80, %p81
      %p83 = scmp.ne.s32.totalorder %s72, %s73
      %p84 = scmp.eq.s32.totalorder %s17, 0
      %p85 = por %p83, %p84
      %p86 = scmp.ne.s32.totalorder %s72, %s73
      %p87 = scmp.eq.s32.totalorder %s18, 1
      %p88 = por %p86, %p87
      %p90 = scmp.ne.s32.totalorder %s73, %s89
      %p91 = scmp.eq.s32.totalorder %s18, 0
      %p92 = por %p90, %p91
      %s93 = ssub.s32 %s12, %s19
      %p94 = scmp.eq.s32.totalorder %s93, 0
      %s96 = sadd.s32 %s95, 1
      %s97 = scalar_select %p94, %s95, %s96
      %p100 = pneg %p94
      %p101 = scmp.eq.s32.totalorder %s12, 1
      %p102 = por %p100, %p101
      %p103 = scmp.ne.s32.totalorder %s95, %s98
      %p104 = scmp.eq.s32.totalorder %s12, 0
      %p105 = por %p103, %p104
      %p106 = scmp.ne.s32.totalorder %s95, %s98
      %p107 = scmp.eq.s32.totalorder %s17, 1
      %p108 = por %p106, %p107
      %p109 = scmp.ne.s32.totalorder %s98, %s99
      %p110 = scmp.eq.s32.totalorder %s17, 0
      %p111 = por %p109, %p110
      %p112 = scmp.ne.s32.totalorder %s98, %s99
      %p113 = scmp.eq.s32.totalorder %s18, 1
      %p114 = por %p112, %p113
      %p116 = scmp.ne.s32.totalorder %s99, %s115
      %p117 = scmp.eq.s32.totalorder %s18, 0
      %p118 = por %p116, %p117
      %p119 = scmp.le.s32.totalorder 1, %s12
      %p120 = scmp.lt.s32.totalorder %s12, 3
      %p121 = pnand %p119, %p120
      %p122 = pneg %p121
      // Predicated region
      $region9: #{tpu_custom_call.1} parent=5 // pred_check
        _
      $region10: #{tpu_custom_call.1} parent=5 // pred_check_branch
        %124 = sbr.rel (%p121) target = $region12
      $region11: #{tpu_custom_call.1} parent=5 // pred_region
        %s125 = ssub.s32 %s12, 1
        // Predicated region
        $region13: #{tpu_custom_call.1} parent=11 // pred_check
          %p126 = pneg %p59
        $region14: #{tpu_custom_call.1} parent=11 // pred_check_branch
          %128 = sbr.rel (%p126) target = $region16
        $region15: #{tpu_custom_call.1} parent=11 // pred_region
          _
        $region16: #{tpu_custom_call.1} parent=11 // pred_fallthru
          _
      $region12: #{tpu_custom_call.1} parent=5 // pred_fallthru
        _
      %p129 = scmp.lt.s32.totalorder %s12, 2
      // Predicated region
      $region17: #{tpu_custom_call.1} parent=5 // pred_check
        %p130 = pneg %p129
      $region18: #{tpu_custom_call.1} parent=5 // pred_check_branch
        %132 = sbr.rel (%p130) target = $region20
      $region19: #{tpu_custom_call.1} parent=5 // pred_region
        // Predicated region
        $region21: #{tpu_custom_call.1} parent=19 // pred_check
          %p133 = pneg %p32
        $region22: #{tpu_custom_call.1} parent=19 // pred_check_branch
          %135 = sbr.rel (%p133) target = $region24
        $region23: #{tpu_custom_call.1} parent=19 // pred_region
          %s136 = smul.u32 8, %s12
          %p137 = scmp.lt.s32.totalorder %s136, 15
          %s138 = scalar_select %p137, %s136, 15
          %s139 = scalar_lea.vmem %s0, %s138
          %s140 = smul.u32 8, %s12
        $region24: #{tpu_custom_call.1} parent=19 // pred_fallthru
          _
        // Predicated region
        $region25: #{tpu_custom_call.1} parent=19 // pred_check
          %p141 = pneg %p79
        $region26: #{tpu_custom_call.1} parent=19 // pred_check_branch
          %143 = sbr.rel (%p141) target = $region28
        $region27: #{tpu_custom_call.1} parent=19 // pred_region
          %s144 = smul.u32 8, %s12
          %p145 = scmp.lt.s32.totalorder %s144, 15
          %s146 = scalar_select %p145, %s144, 15
          %s147 = smul.addr %s146, 4
          %s148 = scalar_lea.vmem %s2, %s147
          %s149 = smul.u32 8, %s12
        $region28: #{tpu_custom_call.1} parent=19 // pred_fallthru
          _
      $region20: #{tpu_custom_call.1} parent=5 // pred_fallthru
        _
      %p150 = scmp.le.s32.totalorder 1, %s12
      %p151 = scmp.lt.s32.totalorder %s12, 3
      %p152 = pnand %p150, %p151
      %p153 = pneg %p152
      // Predicated region
      $region29: #{tpu_custom_call.1} parent=5 // pred_check
        _
      $region30: #{tpu_custom_call.1} parent=5 // pred_check_branch
        %155 = sbr.rel (%p152) target = $region32
      $region31: #{tpu_custom_call.1} parent=5 // pred_region
        %s156 = ssub.s32 %s12, 1
        %s157 = smul.u32 8, %s17
        %p158 = scmp.lt.s32.totalorder %s157, 15
        %s159 = scalar_select %p158, %s157, 15
        %s160 = scalar_lea.vmem %s0, %s159
        %p161 = pneg %p38
        %p162 = pneg %p35
        %p163 = pneg %p59
        %p164 = pneg %p56
        %s165 = smul.u32 8, %s17
        %p166 = scmp.lt.s32.totalorder %s165, 15
        %s167 = scalar_select %p166, %s165, 15
        %s168 = smul.addr %s167, 4
        %s169 = scalar_lea.vmem %s2, %s168
        %p170 = pneg %p85
        %p171 = pneg %p82
        %p172 = pneg %p111
        %p173 = pneg %p108
        %s174 = sand.u32 %s98, 1
        %s175 = scalar_lea.sflag [#allocation3], %s174
        %s176 = sand.u32 %s98, 1
        %s177 = smul.addr %s176, 64
        %s178 = scalar_lea.vmem [#allocation2], %s177
        %s179 = smul.u32 8, %s17
        %p180 = scmp.lt.s32.totalorder %s179, 15
        %s181 = scalar_select %p180, %s179, 15
        %s182 = scalar_lea.vmem %s0, %s181
        %s183 = smul.u32 8, %s17
        %s184 = smul.u32 8, %s17
        %p185 = scmp.lt.s32.totalorder %s184, 15
        %s186 = scalar_select %p185, %s184, 15
        %s187 = smul.addr %s186, 4
        %s188 = scalar_lea.vmem %s2, %s187
        %s189 = smul.u32 8, %s17
        %s190 = smul.u32 8, %s17
        %v191 = vld [vmem:[%s182] sm:$0x1]
        %v192 = vld [vmem:[%s182 + $0x1] sm:$0x1]
        %v193 = vld [vmem:[%s182 + $0x2] sm:$0x1]
        %v194 = vld [vmem:[%s182 + $0x3] sm:$0x1]
        %v195 = vld [vmem:[%s182 + $0x4] sm:$0x1]
        %v196 = vld [vmem:[%s182 + $0x5] sm:$0x1]
        %v197 = vld [vmem:[%s182 + $0x6] sm:$0x1]
        %v198 = vld [vmem:[%s182 + $0x7] sm:$0x1]
        %199 = vst [vmem:[%s178] sm:$0x1] %v191
        %200 = vst [vmem:[%s178 + $0x8] sm:$0x1] %v192
        %201 = vst [vmem:[%s178 + $0x10] sm:$0x1] %v193
        %202 = vst [vmem:[%s178 + $0x18] sm:$0x1] %v194
        %203 = vst [vmem:[%s178 + $0x20] sm:$0x1] %v195
        %204 = vst [vmem:[%s178 + $0x28] sm:$0x1] %v196
        %205 = vst [vmem:[%s178 + $0x30] sm:$0x1] %v197
        %206 = vst [vmem:[%s178 + $0x38] sm:$0x1] %v198
        %v207 = vld [vmem:[%s1] sm:$0xf]
        %208 = vst [vmem:[%s178 + $0x1] sm:$0xf] %v207
        %209 = vst [vmem:[%s178 + $0x9] sm:$0xf] %v207
        %210 = vst [vmem:[%s178 + $0x11] sm:$0xf] %v207
        %211 = vst [vmem:[%s178 + $0x19] sm:$0xf] %v207
        %212 = vst [vmem:[%s178 + $0x21] sm:$0xf] %v207
        %213 = vst [vmem:[%s178 + $0x29] sm:$0xf] %v207
        %214 = vst [vmem:[%s178 + $0x31] sm:$0xf] %v207
        %215 = vst [vmem:[%s178 + $0x39] sm:$0xf] %v207
        %v216 = vld [vmem:[%s188] sm:$0x7]
        %v217 = vld [vmem:[%s188 + $0x4] sm:$0x7]
        %v218 = vld [vmem:[%s188 + $0x8] sm:$0x7]
        %v219 = vld [vmem:[%s188 + $0xc] sm:$0x7]
        %v220 = vld [vmem:[%s188 + $0x10] sm:$0x7]
        %v221 = vld [vmem:[%s188 + $0x14] sm:$0x7]
        %v222 = vld [vmem:[%s188 + $0x18] sm:$0x7]
        %v223 = vld [vmem:[%s188 + $0x1c] sm:$0x7]
        %224 = vst [vmem:[%s178 + $0x5] sm:$0x7] %v216
        %225 = vst [vmem:[%s178 + $0xd] sm:$0x7] %v217
        %226 = vst [vmem:[%s178 + $0x15] sm:$0x7] %v218
        %227 = vst [vmem:[%s178 + $0x1d] sm:$0x7] %v219
        %228 = vst [vmem:[%s178 + $0x25] sm:$0x7] %v220
        %229 = vst [vmem:[%s178 + $0x2d] sm:$0x7] %v221
        %230 = vst [vmem:[%s178 + $0x35] sm:$0x7] %v222
        %231 = vst [vmem:[%s178 + $0x3d] sm:$0x7] %v223
        %s232 = sand.u32 %s98, 1
        %s233 = scalar_lea.sflag [#allocation3], %s232
        %s234 = sand.u32 %s98, 1
        %s235 = smul.addr %s234, 64
        %s236 = scalar_lea.vmem [#allocation2], %s235
        // Predicated region
        $region33: #{tpu_custom_call.1} parent=31 // pred_check
          %p237 = pneg %p108
        $region34: #{tpu_custom_call.1} parent=31 // pred_check_branch
          %239 = sbr.rel (%p237) target = $region36
        $region35: #{tpu_custom_call.1} parent=31 // pred_region
          %s240 = smul.u32 8, %s17
          %s242 = ssub.s32 1024, 1024
          %243 = vsyncadd %s233, %s242
          %s244 = smul.addr %s240, 128
          %s245 = scalar_lea.hbm %s3, %s244
          %s246 = sshll.u32 %s236, 4
          %s247 = int_to_ptr.vmem [resolvable:$true] %s246
          %252 = dma.vmem_to_hbm [thread:$0]  %s247, 1024, %s245, %s233, 128, 128, 8
        $region36: #{tpu_custom_call.1} parent=31 // pred_fallthru
          _
      $region32: #{tpu_custom_call.1} parent=5 // pred_fallthru
        _
      %p253 = scmp.le.s32.totalorder 2, %s12
      // Predicated region
      $region37: #{tpu_custom_call.1} parent=5 // pred_check
        %p254 = pneg %p253
      $region38: #{tpu_custom_call.1} parent=5 // pred_check_branch
        %256 = sbr.rel (%p254) target = $region40
      $region39: #{tpu_custom_call.1} parent=5 // pred_region
        %s257 = ssub.s32 %s12, 2
        // Predicated region
        $region41: #{tpu_custom_call.1} parent=39 // pred_check
          %p258 = pneg %p114
        $region42: #{tpu_custom_call.1} parent=39 // pred_check_branch
          %260 = sbr.rel (%p258) target = $region44
        $region43: #{tpu_custom_call.1} parent=39 // pred_region
          %s261 = sand.u32 %s99, 1
          %s262 = scalar_lea.sflag [#allocation3], %s261
          %s263 = sand.u32 %s99, 1
          %s264 = smul.addr %s263, 64
          %s265 = scalar_lea.vmem [#allocation2], %s264
          %266 = dma.done %s262, 1024
        $region44: #{tpu_custom_call.1} parent=39 // pred_fallthru
          _
      $region40: #{tpu_custom_call.1} parent=5 // pred_fallthru
        _
    $region6: #{tpu_custom_call.1} parent=1 // loop_footer
      %s16 = sadd.s32 1, %s12
    $region7: #{tpu_custom_call.1} parent=1 // loop_footer_branch
      %11 = sbr.rel target = $region3
    $region8: #{tpu_custom_call.1} parent=1 // loop_exit
      _
    %267 = vsyncpa [#allocation3], 1
    %s268 = scalar_lea.sflag [#allocation3], 1
    %269 = vsyncpa %s268, 1

</llo_original>
